<compile_context>
chip_gen: v7x
topology: tpu7x:2x2x1
jax: 0.10.0
libtpu: 0.0.40
codegen_flags: <defaults>
</compile_context>

<pallas_src>
import functools

import jax
import jax.numpy as jnp
from jax.experimental import pallas as pl
from jax.experimental.pallas import tpu as pltpu

LANE = 128  # all feature dims are zero-padded to one full vreg lane width


def _round_up(n, m):
    return (n + m - 1) // m * m


def _actor_critic_kernel(x_ref, w1_ref, w23_ref, b_ref, out_ref):
    """One batch tile: x [TB,d_in] -> fused (pi | v | zero-pad) output [TB,128]."""
    x = x_ref[...].astype(jnp.bfloat16)          # [TB, d_in]   (cast in-kernel: no extra XLA op)
    b = b_ref[...]                               # [8, 128] f32, rows 0,1,2 used

    # fc1 + ReLU   (padded cols of W1 / bias lanes are zero -> padded lanes of h1 are 0)
    h1 = jnp.maximum(
        jnp.dot(x, w1_ref[...], preferred_element_type=jnp.float32) + b[0:1, :], 0.0)
    # fc2 + ReLU
    h2 = jnp.maximum(
        jnp.dot(h1.astype(jnp.bfloat16), w23_ref[0],
                preferred_element_type=jnp.float32) + b[1:2, :], 0.0)
    # fused heads: cols [0:n_actions] = pi logits, col [n_actions] = v, rest = 0 (sliced off).
    out_ref[...] = (
        jnp.dot(h2.astype(jnp.bfloat16), w23_ref[1],
                preferred_element_type=jnp.float32) + b[2:3, :]).astype(out_ref.dtype)


@functools.partial(jax.jit, static_argnames=("n_actions",))
def actor_critic_forward(x, w1_p, w23_p, b_p, *, n_actions):
    """x: [B, input_dims] f32. Returns (pi [B, n_actions], v [B, 1]) in f32."""
    B, d_in = x.shape

    # Batch tiling: single tile for tiny actor-step batches; otherwise big tiles (<=2048 rows)
    # capped so there are >= 2 grid steps (v7x has 2 TCs sharded along the "parallel" axis).
    if B < 16:
        tb = B                                              # block == full dim (always legal)
    else:
        tb = min(2048, _round_up(pl.cdiv(B, 2), 8))
    grid = (pl.cdiv(B, tb),)                                # partial last block handled by Pallas

    out = pl.pallas_call(
        _actor_critic_kernel,
        out_shape=jax.ShapeDtypeStruct((B, LANE), jnp.float32),
        grid=grid,
        in_specs=[
            pl.BlockSpec((tb, d_in), lambda i: (i, 0)),          # x: tiled over batch, un-padded
            pl.BlockSpec(w1_p.shape, lambda i: (0, 0)),          # W1 [d_in,128]: VMEM-resident
            pl.BlockSpec(w23_p.shape, lambda i: (0, 0, 0)),      # W2|Whead [2,128,128]: resident
            pl.BlockSpec(b_p.shape, lambda i: (0, 0)),           # biases [8,128]: resident
        ],
        out_specs=pl.BlockSpec((tb, LANE), lambda i: (i, 0)),
        compiler_params=pltpu.CompilerParams(
            dimension_semantics=("parallel",)),
    )(x, w1_p, w23_p, b_p)

    pi = out[:, :n_actions]
    v = out[:, n_actions:n_actions + 1]
    return pi, v


def init_params(key, input_dims, fc1_dims, fc2_dims, n_actions):
    """Deterministic init mimicking nn.Linear's U(-1/sqrt(fan_in), 1/sqrt(fan_in))."""
    keys = jax.random.split(key, 8)

    def lin(kw, kb, fan_in, fan_out):
        bound = 1.0 / jnp.sqrt(jnp.float32(fan_in))
        w = jax.random.uniform(kw, (fan_in, fan_out), jnp.float32, -bound, bound)
        b = jax.random.uniform(kb, (1, fan_out), jnp.float32, -bound, bound)
        return w, b

    w1, b1 = lin(keys[0], keys[1], input_dims, fc1_dims)
    w2, b2 = lin(keys[2], keys[3], fc1_dims, fc2_dims)
    wpi, bpi = lin(keys[4], keys[5], fc2_dims, n_actions)
    wv, bv = lin(keys[6], keys[7], fc2_dims, 1)
    return dict(w1=w1, b1=b1, w2=w2, b2=b2, wpi=wpi, bpi=bpi, wv=wv, bv=bv)


def pack_params(p, input_dims, fc1_dims, fc2_dims, n_actions):
    """Pack 8 small tensors into 3 lane-dense buffers (done once at init).

    w1_p  : [input_dims, 128] bf16  (no 128-row padding of K -> no in-kernel slicing)
    w23_p : [2, 128, 128]     bf16  (fc2 and fused pi|v head)
    b_p   : [8, 128]          f32   (rows 0,1,2 = b1, b2, b_head)
    """
    assert max(fc1_dims, fc2_dims, n_actions + 1) <= LANE and input_dims <= LANE, \
        "this packed layout supports feature dims <= 128"

    w1_p = jnp.zeros((input_dims, LANE), jnp.float32).at[:, :fc1_dims].set(p["w1"])

    w23_p = jnp.zeros((2, LANE, LANE), jnp.float32)
    w23_p = w23_p.at[0, :fc1_dims, :fc2_dims].set(p["w2"])
    w23_p = w23_p.at[1, :fc2_dims, :n_actions].set(p["wpi"])       # fused head: pi cols
    w23_p = w23_p.at[1, :fc2_dims, n_actions].set(p["wv"][:, 0])   # fused head: v col

    b_p = jnp.zeros((8, LANE), jnp.float32)
    b_p = b_p.at[0, :fc1_dims].set(p["b1"][0])
    b_p = b_p.at[1, :fc2_dims].set(p["b2"][0])
    b_p = b_p.at[2, :n_actions].set(p["bpi"][0])
    b_p = b_p.at[2, n_actions].set(p["bv"][0, 0])

    return w1_p.astype(jnp.bfloat16), w23_p.astype(jnp.bfloat16), b_p


def reference_forward(x, p):
    h1 = jnp.maximum(x @ p["w1"] + p["b1"], 0.0)
    h2 = jnp.maximum(h1 @ p["w2"] + p["b2"], 0.0)
    return h2 @ p["wpi"] + p["bpi"], h2 @ p["wv"] + p["bv"]


if __name__ == "__main__":
    B, input_dims, fc1_dims, fc2_dims, n_actions = 8, 8, 32, 32, 4

    key = jax.random.PRNGKey(0)
    k_obs, k_par, k_obs2 = jax.random.split(key, 3)

    params = init_params(k_par, input_dims, fc1_dims, fc2_dims, n_actions)
    w1_p, w23_p, b_p = pack_params(params, input_dims, fc1_dims, fc2_dims, n_actions)

    # bf16 operand path -> compare against the f32 reference with a bf16-appropriate tolerance.
    TOL = 3e-2

    # Small single-tile (actor-step) case.
    obs = jax.random.normal(k_obs, (B, input_dims), jnp.float32)
    pi, v = actor_critic_forward(obs, w1_p, w23_p, b_p, n_actions=n_actions)
    jax.block_until_ready((pi, v))

    pi_ref, v_ref = reference_forward(obs, params)
    assert pi.shape == (B, n_actions) and v.shape == (B, 1)
    assert jnp.allclose(pi, pi_ref, atol=TOL), "pi mismatch vs reference"
    assert jnp.allclose(v, v_ref, atol=TOL), "v mismatch vs reference"

    # Multi-tile rollout-style case: exercises the cdiv grid + partial last block path.
    B2 = 1000
    obs2 = jax.random.normal(k_obs2, (B2, input_dims), jnp.float32)
    pi2, v2 = actor_critic_forward(obs2, w1_p, w23_p, b_p, n_actions=n_actions)
    jax.block_until_ready((pi2, v2))

    pi2_ref, v2_ref = reference_forward(obs2, params)
    assert pi2.shape == (B2, n_actions) and v2.shape == (B2, 1)
    assert jnp.allclose(pi2, pi2_ref, atol=TOL), "pi mismatch vs reference (batched)"
    assert jnp.allclose(v2, v2_ref, atol=TOL), "v mismatch vs reference (batched)"

    print("KERNEL_OK")
</pallas_src>

<mosaic_0001>
module attributes {stable_mosaic.version = 11 : i64} {
  func.func @_actor_critic_kernel(%arg0: i32, %arg1: memref<8x8xf32, #tpu.memory_space<vmem>>, %arg2: memref<8x128xbf16, #tpu.memory_space<vmem>>, %arg3: memref<2x128x128xbf16, #tpu.memory_space<vmem>>, %arg4: memref<8x128xf32, #tpu.memory_space<vmem>>, %arg5: memref<8x128xf32, #tpu.memory_space<vmem>>) attributes {dimension_semantics = [#tpu.dimension_semantics<parallel>], iteration_bounds = array<i64: 1>, scalar_prefetch = 0 : i64, scratch_operands = 0 : i64, tpu.core_type = #tpu.core_type<tc>, window_params = [{transform_indices = @transform_0, window_bounds = array<i64: 8, 8>}, {pipeline_mode = #tpu.pipeline_mode<synchronous>, transform_indices = @transform_1, window_bounds = array<i64: 8, 128>}, {pipeline_mode = #tpu.pipeline_mode<synchronous>, transform_indices = @transform_2, window_bounds = array<i64: 2, 128, 128>}, {pipeline_mode = #tpu.pipeline_mode<synchronous>, transform_indices = @transform_3, window_bounds = array<i64: 8, 128>}, {transform_indices = @transform_4, window_bounds = array<i64: 8, 128>}]} {
    %c0 = arith.constant 0 : index
    %c0_0 = arith.constant 0 : index
    %0 = vector.load %arg1[%c0, %c0_0] : memref<8x8xf32, #tpu.memory_space<vmem>>, vector<8x8xf32>
    %1 = arith.truncf %0 : vector<8x8xf32> to vector<8x8xbf16>
    %c0_1 = arith.constant 0 : index
    %c0_2 = arith.constant 0 : index
    %2 = vector.load %arg4[%c0_1, %c0_2] : memref<8x128xf32, #tpu.memory_space<vmem>>, vector<8x128xf32>
    %c0_3 = arith.constant 0 : index
    %c0_4 = arith.constant 0 : index
    %3 = vector.load %arg2[%c0_3, %c0_4] : memref<8x128xbf16, #tpu.memory_space<vmem>>, vector<8x128xbf16>
    %cst = arith.constant dense<0.000000e+00> : vector<8x128xf32>
    %4 = tpu.matmul %1, %3, %cst {dimension_numbers = #tpu.dot_dimension_numbers<[1], [0], [0], [1], [0, 0, 1, 1], [], []>} : vector<8x8xbf16>, vector<8x128xbf16>, vector<8x128xf32> -> vector<8x128xf32>
    %5 = vector.extract_strided_slice %2 {offsets = [0, 0], sizes = [1, 128], strides = [1, 1]} : vector<8x128xf32> to vector<1x128xf32>
    %6 = vector.broadcast %5 : vector<1x128xf32> to vector<8x128xf32>
    %7 = arith.addf %4, %6 : vector<8x128xf32>
    %cst_5 = arith.constant 0.000000e+00 : f32
    %8 = vector.broadcast %cst_5 : f32 to vector<8x128xf32>
    %9 = arith.maximumf %7, %8 : vector<8x128xf32>
    %10 = arith.truncf %9 : vector<8x128xf32> to vector<8x128xbf16>
    %c0_6 = arith.constant 0 : index
    %c0_7 = arith.constant 0 : index
    %c0_8 = arith.constant 0 : index
    %11 = vector.load %arg3[%c0_6, %c0_7, %c0_8] : memref<2x128x128xbf16, #tpu.memory_space<vmem>>, vector<1x128x128xbf16>
    %12 = vector.shape_cast %11 : vector<1x128x128xbf16> to vector<128x128xbf16>
    %cst_9 = arith.constant dense<0.000000e+00> : vector<8x128xf32>
    %13 = tpu.matmul %10, %12, %cst_9 {dimension_numbers = #tpu.dot_dimension_numbers<[1], [0], [0], [1], [0, 0, 1, 1], [], []>} : vector<8x128xbf16>, vector<128x128xbf16>, vector<8x128xf32> -> vector<8x128xf32>
    %14 = vector.extract_strided_slice %2 {offsets = [1, 0], sizes = [1, 128], strides = [1, 1]} : vector<8x128xf32> to vector<1x128xf32>
    %15 = vector.broadcast %14 : vector<1x128xf32> to vector<8x128xf32>
    %16 = arith.addf %13, %15 : vector<8x128xf32>
    %cst_10 = arith.constant 0.000000e+00 : f32
    %17 = vector.broadcast %cst_10 : f32 to vector<8x128xf32>
    %18 = arith.maximumf %16, %17 : vector<8x128xf32>
    %19 = arith.truncf %18 : vector<8x128xf32> to vector<8x128xbf16>
    %c1 = arith.constant 1 : index
    %c0_11 = arith.constant 0 : index
    %c0_12 = arith.constant 0 : index
    %20 = vector.load %arg3[%c1, %c0_11, %c0_12] : memref<2x128x128xbf16, #tpu.memory_space<vmem>>, vector<1x128x128xbf16>
    %21 = vector.shape_cast %20 : vector<1x128x128xbf16> to vector<128x128xbf16>
    %cst_13 = arith.constant dense<0.000000e+00> : vector<8x128xf32>
    %22 = tpu.matmul %19, %21, %cst_13 {dimension_numbers = #tpu.dot_dimension_numbers<[1], [0], [0], [1], [0, 0, 1, 1], [], []>} : vector<8x128xbf16>, vector<128x128xbf16>, vector<8x128xf32> -> vector<8x128xf32>
    %23 = vector.extract_strided_slice %2 {offsets = [2, 0], sizes = [1, 128], strides = [1, 1]} : vector<8x128xf32> to vector<1x128xf32>
    %24 = vector.broadcast %23 : vector<1x128xf32> to vector<8x128xf32>
    %25 = arith.addf %22, %24 : vector<8x128xf32>
    %c0_14 = arith.constant 0 : index
    %c0_15 = arith.constant 0 : index
    %26 = vector.load %arg5[%c0_14, %c0_15] : memref<8x128xf32, #tpu.memory_space<vmem>>, vector<8x128xf32>
    tpu.vector_store %arg5[%c0_14, %c0_15], %25 {strides = array<i32>} : memref<8x128xf32, #tpu.memory_space<vmem>>, vector<8x128xf32>,
    return
  }
  func.func @transform_0(%arg0: i32) -> (i32, i32) {
    %c0_i32 = arith.constant 0 : i32
    %c0_i32_0 = arith.constant 0 : i32
    return %arg0, %c0_i32 : i32, i32
  }
  func.func @transform_1(%arg0: i32) -> (i32, i32) {
    %c0_i32 = arith.constant 0 : i32
    %c0_i32_0 = arith.constant 0 : i32
    %c0_i32_1 = arith.constant 0 : i32
    return %c0_i32, %c0_i32_0 : i32, i32
  }
  func.func @transform_2(%arg0: i32) -> (i32, i32, i32) {
    %c0_i32 = arith.constant 0 : i32
    %c0_i32_0 = arith.constant 0 : i32
    %c0_i32_1 = arith.constant 0 : i32
    %c0_i32_2 = arith.constant 0 : i32
    return %c0_i32, %c0_i32_0, %c0_i32_1 : i32, i32, i32
  }
  func.func @transform_3(%arg0: i32) -> (i32, i32) {
    %c0_i32 = arith.constant 0 : i32
    %c0_i32_0 = arith.constant 0 : i32
    %c0_i32_1 = arith.constant 0 : i32
    return %c0_i32, %c0_i32_0 : i32, i32
  }
  func.func @transform_4(%arg0: i32) -> (i32, i32) {
    %c0_i32 = arith.constant 0 : i32
    %c0_i32_0 = arith.constant 0 : i32
    return %arg0, %c0_i32 : i32, i32
  }
}

</mosaic_0001>

<llo_original>
// kernel: actor_critic_forward.1
$region0: #{actor_critic_forward.1}
  #allocation0 [shape = 'u32[]', space=smem, size = 0x4, offset = 0x4, fixed_abs, tag = 'smem constant byte address 0x4 - core index']
  #allocation1 [shape = 'u32[144,128]{1,0:T(1,128)}', space=vmem, size = 0x12000, scoped, tag = 'internal scratch']
  %s0 = inlined_call_operand.hbm [shape: f32[8,8], index: 0, kind: input, shape index: {}]
  %s1 = inlined_call_operand.hbm [shape: bf16[8,128], index: 1, kind: input, shape index: {}]
  %s2 = inlined_call_operand.hbm [shape: bf16[2,128,128], index: 2, kind: input, shape index: {}]
  %s3 = inlined_call_operand.vmem [shape: f32[8,128], index: 3, kind: input, shape index: {}]
  %s4 = inlined_call_operand.vmem [shape: f32[8,128], index: 4, kind: output, shape index: {}]
  %s5 = sld [smem:[#allocation0]]
  $region38: #{actor_critic_forward.1} parent=0
    _
  %s7 = ssub.s32 1, %s5
  %s8 = scalar_select 0, %s7, %s5
  $region1: #{actor_critic_forward.1} parent=0
    #allocation2 [shape = 'u8[4096]{0}', space=vmem, size = 0x1000, scoped, tag = 'input window, operand 0, single buffered']
    #allocation3 [shape = 's32[1]{0}', space=sflag, size = 0x4, scoped, tag = 'scoped memory for actor_critic_forward.1']
    #allocation4 [shape = 'u8[2048]{0}', space=vmem, size = 0x800, scoped, tag = 'input window, operand 1, single buffered']
    #allocation5 [shape = 's32[1]{0}', space=sflag, size = 0x4, scoped, tag = 'scoped memory for actor_critic_forward.1']
    #allocation6 [shape = 'u8[65536]{0}', space=vmem, size = 0x10000, scoped, tag = 'input window, operand 2, single buffered']
    %9 = vsyncpa [#allocation3], 0
    %10 = vsyncpa [#allocation5], 0
    // Predicated region
    $region2: #{actor_critic_forward.1} parent=1 // pred_check
      _
    $region3: #{actor_critic_forward.1} parent=1 // pred_check_branch
      %12 = sbr.rel (0) target = $region5
    $region4: #{actor_critic_forward.1} parent=1 // pred_region
      %s14 = ssub.s32 128, 128
      %15 = vsyncadd [#allocation3], %s14
      %s17 = sshll.u32 [#allocation2], 4
      %s18 = int_to_ptr.vmem [resolvable:$true] %s17
      %20 = dma.hbm_to_vmem [thread:$0]  %s0, 128, %s18, [#allocation3]
    $region5: #{actor_critic_forward.1} parent=1 // pred_fallthru
      _
    // Predicated region
    $region6: #{actor_critic_forward.1} parent=1 // pred_check
      _
    $region7: #{actor_critic_forward.1} parent=1 // pred_check_branch
      %22 = sbr.rel (0) target = $region9
    $region8: #{actor_critic_forward.1} parent=1 // pred_region
      %s24 = ssub.s32 64, 64
      %25 = vsyncadd [#allocation5], %s24
      %s27 = sshll.u32 [#allocation4], 4
      %s28 = int_to_ptr.vmem [resolvable:$true] %s27
      %30 = dma.hbm_to_vmem [thread:$0]  %s1, 64, %s28, [#allocation5]
    $region9: #{actor_critic_forward.1} parent=1 // pred_fallthru
      _
    // Predicated region
    $region10: #{actor_critic_forward.1} parent=1 // pred_check
      _
    $region11: #{actor_critic_forward.1} parent=1 // pred_check_branch
      %32 = sbr.rel (0) target = $region13
    $region12: #{actor_critic_forward.1} parent=1 // pred_region
      %s34 = ssub.s32 2048, 2048
      %35 = vsyncadd [#allocation5], %s34
      %s36 = sshll.u32 [#allocation6], 4
      %s37 = int_to_ptr.vmem [resolvable:$true] %s36
      %42 = dma.hbm_to_vmem [thread:$0]  %s2, 2048, %s37, [#allocation5], 64, 64, 4
    $region13: #{actor_critic_forward.1} parent=1 // pred_fallthru
      _
    // Predicated region
    $region14: #{actor_critic_forward.1} parent=1 // pred_check
      _
    $region15: #{actor_critic_forward.1} parent=1 // pred_check_branch
      %44 = sbr.rel (0) target = $region17
    $region16: #{actor_critic_forward.1} parent=1 // pred_region
      _
    $region17: #{actor_critic_forward.1} parent=1 // pred_fallthru
      _
    // Predicated region
    $region18: #{actor_critic_forward.1} parent=1 // pred_check
      _
    $region19: #{actor_critic_forward.1} parent=1 // pred_check_branch
      %46 = sbr.rel (0) target = $region21
    $region20: #{actor_critic_forward.1} parent=1 // pred_region
      %47 = dma.done [#allocation3], 128
    $region21: #{actor_critic_forward.1} parent=1 // pred_fallthru
      _
    // Predicated region
    $region22: #{actor_critic_forward.1} parent=1 // pred_check
      _
    $region23: #{actor_critic_forward.1} parent=1 // pred_check_branch
      %49 = sbr.rel (0) target = $region25
    $region24: #{actor_critic_forward.1} parent=1 // pred_region
      %50 = dma.done [#allocation5], 64
    $region25: #{actor_critic_forward.1} parent=1 // pred_fallthru
      _
    // Predicated region
    $region26: #{actor_critic_forward.1} parent=1 // pred_check
      _
    $region27: #{actor_critic_forward.1} parent=1 // pred_check_branch
      %52 = sbr.rel (0) target = $region29
    $region28: #{actor_critic_forward.1} parent=1 // pred_region
      %53 = dma.done [#allocation5], 2048
    $region29: #{actor_critic_forward.1} parent=1 // pred_fallthru
      _
    %v55 = vld [vmem:[#allocation2] sm:$0xff]
    %v56 = vpack.c.bf16 %v55, %v55
    %v57 = vld [vmem:[%s3] sm:$0xff]
    %v58 = vld [vmem:[#allocation4] sm:$0xf]
    %v59 = vlaneseq
    %v60 = vshrl.u32 %v59, 7
    %v61 = vsub.s32 0, %v60
    %v62 = vrot.slane %v57, %v61
    %vm63 = vcmask 64512
    %v65 = vsel %vm63, %v56, 0
    %vm67 = vcmask 1043456
    %v69 = vsel %vm67, %v58, 0
    %71 = vmatprep.subr.bf16.mxu0 0
    %72 = vmatpush1.bf16.msra.mxu0 %v69
    %73 = vmatprep.subr.bf16.mxu0 0
    %74 = vmatpush1.bf16.msra.mxu0 0
    %75 = vmatprep.subr.bf16.mxu0 0
    %76 = vmatpush1.bf16.msra.mxu0 0
    %77 = vmatprep.subr.bf16.mxu0 0
    %78 = vmatpush1.bf16.msra.mxu0 0
    %79 = vmatprep.subr.bf16.mxu0 0
    %80 = vmatpush1.bf16.msra.mxu0 0
    %81 = vmatprep.subr.bf16.mxu0 0
    %82 = vmatpush1.bf16.msra.mxu0 0
    %83 = vmatprep.subr.bf16.mxu0 0
    %84 = vmatpush1.bf16.msra.mxu0 0
    %85 = vmatprep.subr.bf16.mxu0 0
    %86 = vmatpush1.bf16.msra.mxu0 0
    %87 = vmatprep.subr.bf16.mxu0 0
    %88 = vmatpush1.bf16.msra.mxu0 0
    %89 = vmatprep.subr.bf16.mxu0 0
    %90 = vmatpush1.bf16.msra.mxu0 0
    %91 = vmatprep.subr.bf16.mxu0 0
    %92 = vmatpush1.bf16.msra.mxu0 0
    %93 = vmatprep.subr.bf16.mxu0 0
    %94 = vmatpush1.bf16.msra.mxu0 0
    %95 = vmatprep.subr.bf16.mxu0 0
    %96 = vmatpush1.bf16.msra.mxu0 0
    %97 = vmatprep.subr.bf16.mxu0 0
    %98 = vmatpush1.bf16.msra.mxu0 0
    %99 = vmatprep.subr.bf16.mxu0 0
    %100 = vmatpush1.bf16.msra.mxu0 0
    %101 = vmatprep.subr.bf16.mxu0 0
    %102 = vmatpush1.bf16.msra.mxu0 0
    %103 = vmatprep.mubr.bf16.mxu0 0
    %104 = vmatmul.mubr.bf16.gmra.mrb[0].mxu0 %v65
    %v105 = vpop.f32.mrb[0].mxu0
    %v106 = vadd.f32 %v62, %v105
    %v107 = vpop.f32.mrb[0].mxu0
    %v108 = vpop.f32.mrb[0].mxu0
    %v109 = vpop.f32.mrb[0].mxu0
    %110 = vdwg.mxu0
    %v111 = vmax.f32 %v106, 0.0
    %v112 = vpack.c.bf16 %v111, %v111
    %v113 = vld [vmem:[#allocation6] sm:$0xf]
    %v114 = vld [vmem:[#allocation6 + $0x4] sm:$0xf]
    %v115 = vld [vmem:[#allocation6 + $0x8] sm:$0xf]
    %v116 = vld [vmem:[#allocation6 + $0xc] sm:$0xf]
    %v117 = vld [vmem:[#allocation6 + $0x10] sm:$0xf]
    %v118 = vld [vmem:[#allocation6 + $0x14] sm:$0xf]
    %v119 = vld [vmem:[#allocation6 + $0x18] sm:$0xf]
    %v120 = vld [vmem:[#allocation6 + $0x1c] sm:$0xf]
    %v121 = vld [vmem:[#allocation6 + $0x20] sm:$0xf]
    %v122 = vld [vmem:[#allocation6 + $0x24] sm:$0xf]
    %v123 = vld [vmem:[#allocation6 + $0x28] sm:$0xf]
    %v124 = vld [vmem:[#allocation6 + $0x2c] sm:$0xf]
    %v125 = vld [vmem:[#allocation6 + $0x30] sm:$0xf]
    %v126 = vld [vmem:[#allocation6 + $0x34] sm:$0xf]
    %v127 = vld [vmem:[#allocation6 + $0x38] sm:$0xf]
    %v128 = vld [vmem:[#allocation6 + $0x3c] sm:$0xf]
    %v129 = vlaneseq
    %v130 = vshrl.u32 %v129, 7
    %v131 = vsub.s32 1, %v130
    %v132 = vrot.slane %v57, %v131
    %v149 = vunpack.c.l.b16 %v113
    %v150 = vunpack.c.l.b16 %v114
    %v151 = vunpack.c.l.b16 %v115
    %v152 = vunpack.c.l.b16 %v116
    %v153 = vunpack.c.l.b16 %v117
    %v154 = vunpack.c.l.b16 %v118
    %v155 = vunpack.c.l.b16 %v119
    %v156 = vunpack.c.l.b16 %v120
    %v157 = vunpack.c.l.b16 %v121
    %v158 = vunpack.c.l.b16 %v122
    %v159 = vunpack.c.l.b16 %v123
    %v160 = vunpack.c.l.b16 %v124
    %v161 = vunpack.c.l.b16 %v125
    %v162 = vunpack.c.l.b16 %v126
    %v163 = vunpack.c.l.b16 %v127
    %v164 = vunpack.c.l.b16 %v128
    %v165 = vpack.c.b16 %v150, %v149
    %v166 = vpack.c.b16 %v152, %v151
    %v167 = vpack.c.b16 %v154, %v153
    %v168 = vpack.c.b16 %v156, %v155
    %v169 = vpack.c.b16 %v158, %v157
    %v170 = vpack.c.b16 %v160, %v159
    %v171 = vpack.c.b16 %v162, %v161
    %v172 = vpack.c.b16 %v164, %v163
    %181 = vmatprep.subr.bf16.mxu0 0
    %182 = vmatpush1.bf16.msra.mxu0 %v165
    %183 = vmatprep.subr.bf16.mxu0 0
    %184 = vmatpush1.bf16.msra.mxu0 %v166
    %185 = vmatprep.subr.bf16.mxu0 0
    %186 = vmatpush1.bf16.msra.mxu0 %v167
    %187 = vmatprep.subr.bf16.mxu0 0
    %188 = vmatpush1.bf16.msra.mxu0 %v168
    %189 = vmatprep.subr.bf16.mxu0 0
    %190 = vmatpush1.bf16.msra.mxu0 %v169
    %191 = vmatprep.subr.bf16.mxu0 0
    %192 = vmatpush1.bf16.msra.mxu0 %v170
    %193 = vmatprep.subr.bf16.mxu0 0
    %194 = vmatpush1.bf16.msra.mxu0 %v171
    %195 = vmatprep.subr.bf16.mxu0 0
    %196 = vmatpush1.bf16.msra.mxu0 %v172
    %197 = vmatprep.subr.bf16.mxu0 0
    %198 = vmatpush1.bf16.msra.mxu0 0
    %199 = vmatprep.subr.bf16.mxu0 0
    %200 = vmatpush1.bf16.msra.mxu0 0
    %201 = vmatprep.subr.bf16.mxu0 0
    %202 = vmatpush1.bf16.msra.mxu0 0
    %203 = vmatprep.subr.bf16.mxu0 0
    %204 = vmatpush1.bf16.msra.mxu0 0
    %205 = vmatprep.subr.bf16.mxu0 0
    %206 = vmatpush1.bf16.msra.mxu0 0
    %207 = vmatprep.subr.bf16.mxu0 0
    %208 = vmatpush1.bf16.msra.mxu0 0
    %209 = vmatprep.subr.bf16.mxu0 0
    %210 = vmatpush1.bf16.msra.mxu0 0
    %211 = vmatprep.subr.bf16.mxu0 0
    %212 = vmatpush1.bf16.msra.mxu0 0
    %213 = vmatprep.mubr.bf16.mxu0 0
    %214 = vmatmul.mubr.bf16.gmra.mrb[0].mxu0 %v112
    %v215 = vpop.f32.mrb[0].mxu0
    %v216 = vadd.f32 %v132, %v215
    %v217 = vpop.f32.mrb[0].mxu0
    %v218 = vpop.f32.mrb[0].mxu0
    %v219 = vpop.f32.mrb[0].mxu0
    %220 = vdwg.mxu0
    %v221 = vmax.f32 %v216, 0.0
    %v222 = vpack.c.bf16 %v221, %v221
    %s223 = scalar_lea.vmem [#allocation6], 64
    %v224 = vld [vmem:[%s223] sm:$0xf]
    %v225 = vld [vmem:[%s223 + $0x4] sm:$0xf]
    %v226 = vld [vmem:[%s223 + $0x8] sm:$0xf]
    %v227 = vld [vmem:[%s223 + $0xc] sm:$0xf]
    %v228 = vld [vmem:[%s223 + $0x10] sm:$0xf]
    %v229 = vld [vmem:[%s223 + $0x14] sm:$0xf]
    %v230 = vld [vmem:[%s223 + $0x18] sm:$0xf]
    %v231 = vld [vmem:[%s223 + $0x1c] sm:$0xf]
    %v232 = vld [vmem:[%s223 + $0x20] sm:$0xf]
    %v233 = vld [vmem:[%s223 + $0x24] sm:$0xf]
    %v234 = vld [vmem:[%s223 + $0x28] sm:$0xf]
    %v235 = vld [vmem:[%s223 + $0x2c] sm:$0xf]
    %v236 = vld [vmem:[%s223 + $0x30] sm:$0xf]
    %v237 = vld [vmem:[%s223 + $0x34] sm:$0xf]
    %v238 = vld [vmem:[%s223 + $0x38] sm:$0xf]
    %v239 = vld [vmem:[%s223 + $0x3c] sm:$0xf]
    %v240 = vlaneseq
    %v241 = vshrl.u32 %v240, 7
    %v242 = vsub.s32 2, %v241
    %v243 = vrot.slane %v57, %v242
    %v260 = vunpack.c.l.b16 %v224
    %v261 = vunpack.c.l.b16 %v225
    %v262 = vunpack.c.l.b16 %v226
    %v263 = vunpack.c.l.b16 %v227
    %v264 = vunpack.c.l.b16 %v228
    %v265 = vunpack.c.l.b16 %v229
    %v266 = vunpack.c.l.b16 %v230
    %v267 = vunpack.c.l.b16 %v231
    %v268 = vunpack.c.l.b16 %v232
    %v269 = vunpack.c.l.b16 %v233
    %v270 = vunpack.c.l.b16 %v234
    %v271 = vunpack.c.l.b16 %v235
    %v272 = vunpack.c.l.b16 %v236
    %v273 = vunpack.c.l.b16 %v237
    %v274 = vunpack.c.l.b16 %v238
    %v275 = vunpack.c.l.b16 %v239
    %v276 = vpack.c.b16 %v261, %v260
    %v277 = vpack.c.b16 %v263, %v262
    %v278 = vpack.c.b16 %v265, %v264
    %v279 = vpack.c.b16 %v267, %v266
    %v280 = vpack.c.b16 %v269, %v268
    %v281 = vpack.c.b16 %v271, %v270
    %v282 = vpack.c.b16 %v273, %v272
    %v283 = vpack.c.b16 %v275, %v274
    %292 = vmatprep.subr.bf16.mxu0 0
    %293 = vmatpush1.bf16.msra.mxu0 %v276
    %294 = vmatprep.subr.bf16.mxu0 0
    %295 = vmatpush1.bf16.msra.mxu0 %v277
    %296 = vmatprep.subr.bf16.mxu0 0
    %297 = vmatpush1.bf16.msra.mxu0 %v278
    %298 = vmatprep.subr.bf16.mxu0 0
    %299 = vmatpush1.bf16.msra.mxu0 %v279
    %300 = vmatprep.subr.bf16.mxu0 0
    %301 = vmatpush1.bf16.msra.mxu0 %v280
    %302 = vmatprep.subr.bf16.mxu0 0
    %303 = vmatpush1.bf16.msra.mxu0 %v281
    %304 = vmatprep.subr.bf16.mxu0 0
    %305 = vmatpush1.bf16.msra.mxu0 %v282
    %306 = vmatprep.subr.bf16.mxu0 0
    %307 = vmatpush1.bf16.msra.mxu0 %v283
    %308 = vmatprep.subr.bf16.mxu0 0
    %309 = vmatpush1.bf16.msra.mxu0 0
    %310 = vmatprep.subr.bf16.mxu0 0
    %311 = vmatpush1.bf16.msra.mxu0 0
    %312 = vmatprep.subr.bf16.mxu0 0
    %313 = vmatpush1.bf16.msra.mxu0 0
    %314 = vmatprep.subr.bf16.mxu0 0
    %315 = vmatpush1.bf16.msra.mxu0 0
    %316 = vmatprep.subr.bf16.mxu0 0
    %317 = vmatpush1.bf16.msra.mxu0 0
    %318 = vmatprep.subr.bf16.mxu0 0
    %319 = vmatpush1.bf16.msra.mxu0 0
    %320 = vmatprep.subr.bf16.mxu0 0
    %321 = vmatpush1.bf16.msra.mxu0 0
    %322 = vmatprep.subr.bf16.mxu0 0
    %323 = vmatpush1.bf16.msra.mxu0 0
    %324 = vmatprep.mubr.bf16.mxu0 0
    %325 = vmatmul.mubr.bf16.gmra.mrb[0].mxu0 %v222
    %v326 = vpop.f32.mrb[0].mxu0
    %v327 = vadd.f32 %v243, %v326
    %v328 = vpop.f32.mrb[0].mxu0
    %v329 = vpop.f32.mrb[0].mxu0
    %v330 = vpop.f32.mrb[0].mxu0
    %331 = vdwg.mxu0
    %332 = vst [vmem:[%s4] sm:$0xff] %v327
    // Predicated region
    $region30: #{actor_critic_forward.1} parent=1 // pred_check
      _
    $region31: #{actor_critic_forward.1} parent=1 // pred_check_branch
      %334 = sbr.rel (0) target = $region33
    $region32: #{actor_critic_forward.1} parent=1 // pred_region
      _
    $region33: #{actor_critic_forward.1} parent=1 // pred_fallthru
      _
    // Predicated region
    $region34: #{actor_critic_forward.1} parent=1 // pred_check
      _
    $region35: #{actor_critic_forward.1} parent=1 // pred_check_branch
      %336 = sbr.rel (0) target = $region37
    $region36: #{actor_critic_forward.1} parent=1 // pred_region
      _
    $region37: #{actor_critic_forward.1} parent=1 // pred_fallthru
      _
    %337 = vsyncpa [#allocation3], 1
    %338 = vsyncpa [#allocation5], 1

</llo_original>
